<compile_context>
chip_gen: v7x
topology: tpu7x:2x2x1
jax: 0.10.0
libtpu: 0.0.40
codegen_flags: <defaults>
</compile_context>

<pallas_src>
import jax
import jax.numpy as jnp
from jax.experimental import pallas as pl
from jax.experimental.pallas import tpu as pltpu


def _actor_ppo_kernel(x_ref, w1_ref, b1_ref, w2_ref, b2_ref,
                      w3_ref, b3_ref, w4_ref, b4_ref, o_ref):
    # Fused 4-layer MLP: (TB, S) @ (S, M) -> relu -> ... -> (TB, A) -> tanh
    x = x_ref[...].astype(jnp.float32)

    h = jnp.dot(x, w1_ref[...].astype(jnp.float32),
                preferred_element_type=jnp.float32) + b1_ref[...].astype(jnp.float32)
    h = jnp.maximum(h, 0.0)

    h = jnp.dot(h, w2_ref[...].astype(jnp.float32),
                preferred_element_type=jnp.float32) + b2_ref[...].astype(jnp.float32)
    h = jnp.maximum(h, 0.0)

    h = jnp.dot(h, w3_ref[...].astype(jnp.float32),
                preferred_element_type=jnp.float32) + b3_ref[...].astype(jnp.float32)
    h = jnp.maximum(h, 0.0)

    a = jnp.dot(h, w4_ref[...].astype(jnp.float32),
                preferred_element_type=jnp.float32) + b4_ref[...].astype(jnp.float32)

    o_ref[...] = jnp.tanh(a).astype(o_ref.dtype)


def actor_ppo_forward(state, w1, b1, w2, b2, w3, b3, w4, b4, *, block_b=256):
    """Pallas equivalent of ActorPPO.forward: tanh of a 4-layer ReLU MLP.

    state: (B, state_dim); weights stored as (in, out); biases as (1, out).
    """
    B, S = state.shape
    M = w1.shape[1]
    A = w4.shape[1]
    assert w1.shape == (S, M) and w2.shape == (M, M) and w3.shape == (M, M)
    assert w4.shape == (M, A)
    assert b1.shape == (1, M) and b2.shape == (1, M) and b3.shape == (1, M)
    assert b4.shape == (1, A)

    # Batch tile: multiple of 8 sublanes, capped at block_b; pad B to fit.
    tb = min(block_b, ((B + 7) // 8) * 8)
    bp = ((B + tb - 1) // tb) * tb
    if bp != B:
        state_p = jnp.zeros((bp, S), state.dtype).at[:B, :].set(state)
    else:
        state_p = state

    grid = (bp // tb,)

    out = pl.pallas_call(
        _actor_ppo_kernel,
        out_shape=jax.ShapeDtypeStruct((bp, A), state.dtype),
        grid=grid,
        in_specs=[
            pl.BlockSpec((tb, S), lambda i: (i, 0)),   # activations: stream per tile
            pl.BlockSpec((S, M), lambda i: (0, 0)),    # weights/biases: VMEM-resident
            pl.BlockSpec((1, M), lambda i: (0, 0)),
            pl.BlockSpec((M, M), lambda i: (0, 0)),
            pl.BlockSpec((1, M), lambda i: (0, 0)),
            pl.BlockSpec((M, M), lambda i: (0, 0)),
            pl.BlockSpec((1, M), lambda i: (0, 0)),
            pl.BlockSpec((M, A), lambda i: (0, 0)),
            pl.BlockSpec((1, A), lambda i: (0, 0)),
        ],
        out_specs=pl.BlockSpec((tb, A), lambda i: (i, 0)),
        compiler_params=pltpu.CompilerParams(
            dimension_semantics=("parallel",),   # shard batch tiles across TCs on v7x
        ),
    )(state_p, w1, b1, w2, b2, w3, b3, w4, b4)

    return out[:B, :]


def _ref_forward(x, w1, b1, w2, b2, w3, b3, w4, b4):
    h = jnp.maximum(x @ w1 + b1, 0.0)
    h = jnp.maximum(h @ w2 + b2, 0.0)
    h = jnp.maximum(h @ w3 + b3, 0.0)
    return jnp.tanh(h @ w4 + b4)


if __name__ == "__main__":
    # Small shapes implied by the module: batch=2, state_dim=16, mid_dim=32,
    # action_dim=4.
    B, S, M, A = 2, 16, 32, 4

    key = jax.random.PRNGKey(0)
    ks = jax.random.split(key, 9)
    state = jax.random.normal(ks[0], (B, S), dtype=jnp.float32)

    w1 = jax.random.normal(ks[1], (S, M), dtype=jnp.float32) * 0.2
    b1 = jax.random.normal(ks[2], (1, M), dtype=jnp.float32) * 0.01
    w2 = jax.random.normal(ks[3], (M, M), dtype=jnp.float32) * 0.2
    b2 = jax.random.normal(ks[4], (1, M), dtype=jnp.float32) * 0.01
    w3 = jax.random.normal(ks[5], (M, M), dtype=jnp.float32) * 0.2
    b3 = jax.random.normal(ks[6], (1, M), dtype=jnp.float32) * 0.01
    # Final layer: std=0.1 init + tiny bias, mirroring layer_norm(std=0.1).
    w4 = jax.random.normal(ks[7], (M, A), dtype=jnp.float32) * 0.1
    b4 = jnp.full((1, A), 1e-6, dtype=jnp.float32)

    y = actor_ppo_forward(state, w1, b1, w2, b2, w3, b3, w4, b4)
    y = jax.block_until_ready(y)

    ref = _ref_forward(state, w1, b1, w2, b2, w3, b3, w4, b4)

    assert y.shape == (B, A), y.shape
    assert y.dtype == state.dtype
    assert bool(jnp.allclose(y, ref, rtol=1e-5, atol=1e-5)), (
        float(jnp.max(jnp.abs(y - ref)))
    )

    # TODO(synk): get__a_noisy__noise / compute__log_prob (Gaussian sampling +
    # log-prob) are not part of forward() and are intentionally not kernelized.
    print("KERNEL_OK")
</pallas_src>

<mosaic_0001>
module attributes {stable_mosaic.version = 11 : i64} {
  func.func @_actor_ppo_kernel(%arg0: i32, %arg1: memref<8x16xf32, #tpu.memory_space<vmem>>, %arg2: memref<16x32xf32, #tpu.memory_space<vmem>>, %arg3: memref<1x32xf32, #tpu.memory_space<vmem>>, %arg4: memref<32x32xf32, #tpu.memory_space<vmem>>, %arg5: memref<1x32xf32, #tpu.memory_space<vmem>>, %arg6: memref<32x32xf32, #tpu.memory_space<vmem>>, %arg7: memref<1x32xf32, #tpu.memory_space<vmem>>, %arg8: memref<32x4xf32, #tpu.memory_space<vmem>>, %arg9: memref<1x4xf32, #tpu.memory_space<vmem>>, %arg10: memref<8x4xf32, #tpu.memory_space<vmem>>) attributes {dimension_semantics = [#tpu.dimension_semantics<parallel>], iteration_bounds = array<i64: 1>, scalar_prefetch = 0 : i64, scratch_operands = 0 : i64, tpu.core_type = #tpu.core_type<tc>, window_params = [{transform_indices = @transform_0, window_bounds = array<i64: 8, 16>}, {pipeline_mode = #tpu.pipeline_mode<synchronous>, transform_indices = @transform_1, window_bounds = array<i64: 16, 32>}, {pipeline_mode = #tpu.pipeline_mode<synchronous>, transform_indices = @transform_2, window_bounds = array<i64: 1, 32>}, {pipeline_mode = #tpu.pipeline_mode<synchronous>, transform_indices = @transform_3, window_bounds = array<i64: 32, 32>}, {pipeline_mode = #tpu.pipeline_mode<synchronous>, transform_indices = @transform_4, window_bounds = array<i64: 1, 32>}, {pipeline_mode = #tpu.pipeline_mode<synchronous>, transform_indices = @transform_5, window_bounds = array<i64: 32, 32>}, {pipeline_mode = #tpu.pipeline_mode<synchronous>, transform_indices = @transform_6, window_bounds = array<i64: 1, 32>}, {pipeline_mode = #tpu.pipeline_mode<synchronous>, transform_indices = @transform_7, window_bounds = array<i64: 32, 4>}, {pipeline_mode = #tpu.pipeline_mode<synchronous>, transform_indices = @transform_8, window_bounds = array<i64: 1, 4>}, {transform_indices = @transform_9, window_bounds = array<i64: 8, 4>}]} {
    %c0 = arith.constant 0 : index
    %c0_0 = arith.constant 0 : index
    %0 = vector.load %arg1[%c0, %c0_0] : memref<8x16xf32, #tpu.memory_space<vmem>>, vector<8x16xf32>
    %c0_1 = arith.constant 0 : index
    %c0_2 = arith.constant 0 : index
    %1 = vector.load %arg2[%c0_1, %c0_2] : memref<16x32xf32, #tpu.memory_space<vmem>>, vector<16x32xf32>
    %cst = arith.constant dense<0.000000e+00> : vector<8x32xf32>
    %2 = tpu.matmul %0, %1, %cst {dimension_numbers = #tpu.dot_dimension_numbers<[1], [0], [0], [1], [0, 0, 1, 1], [], []>} : vector<8x16xf32>, vector<16x32xf32>, vector<8x32xf32> -> vector<8x32xf32>
    %c0_3 = arith.constant 0 : index
    %c0_4 = arith.constant 0 : index
    %3 = vector.load %arg3[%c0_3, %c0_4] : memref<1x32xf32, #tpu.memory_space<vmem>>, vector<1x32xf32>
    %4 = vector.broadcast %3 : vector<1x32xf32> to vector<8x32xf32>
    %5 = arith.addf %2, %4 : vector<8x32xf32>
    %cst_5 = arith.constant 0.000000e+00 : f32
    %6 = vector.broadcast %cst_5 : f32 to vector<8x32xf32>
    %7 = arith.maximumf %5, %6 : vector<8x32xf32>
    %c0_6 = arith.constant 0 : index
    %c0_7 = arith.constant 0 : index
    %8 = vector.load %arg4[%c0_6, %c0_7] : memref<32x32xf32, #tpu.memory_space<vmem>>, vector<32x32xf32>
    %cst_8 = arith.constant dense<0.000000e+00> : vector<8x32xf32>
    %9 = tpu.matmul %7, %8, %cst_8 {dimension_numbers = #tpu.dot_dimension_numbers<[1], [0], [0], [1], [0, 0, 1, 1], [], []>} : vector<8x32xf32>, vector<32x32xf32>, vector<8x32xf32> -> vector<8x32xf32>
    %c0_9 = arith.constant 0 : index
    %c0_10 = arith.constant 0 : index
    %10 = vector.load %arg5[%c0_9, %c0_10] : memref<1x32xf32, #tpu.memory_space<vmem>>, vector<1x32xf32>
    %11 = vector.broadcast %10 : vector<1x32xf32> to vector<8x32xf32>
    %12 = arith.addf %9, %11 : vector<8x32xf32>
    %cst_11 = arith.constant 0.000000e+00 : f32
    %13 = vector.broadcast %cst_11 : f32 to vector<8x32xf32>
    %14 = arith.maximumf %12, %13 : vector<8x32xf32>
    %c0_12 = arith.constant 0 : index
    %c0_13 = arith.constant 0 : index
    %15 = vector.load %arg6[%c0_12, %c0_13] : memref<32x32xf32, #tpu.memory_space<vmem>>, vector<32x32xf32>
    %cst_14 = arith.constant dense<0.000000e+00> : vector<8x32xf32>
    %16 = tpu.matmul %14, %15, %cst_14 {dimension_numbers = #tpu.dot_dimension_numbers<[1], [0], [0], [1], [0, 0, 1, 1], [], []>} : vector<8x32xf32>, vector<32x32xf32>, vector<8x32xf32> -> vector<8x32xf32>
    %c0_15 = arith.constant 0 : index
    %c0_16 = arith.constant 0 : index
    %17 = vector.load %arg7[%c0_15, %c0_16] : memref<1x32xf32, #tpu.memory_space<vmem>>, vector<1x32xf32>
    %18 = vector.broadcast %17 : vector<1x32xf32> to vector<8x32xf32>
    %19 = arith.addf %16, %18 : vector<8x32xf32>
    %cst_17 = arith.constant 0.000000e+00 : f32
    %20 = vector.broadcast %cst_17 : f32 to vector<8x32xf32>
    %21 = arith.maximumf %19, %20 : vector<8x32xf32>
    %c0_18 = arith.constant 0 : index
    %c0_19 = arith.constant 0 : index
    %22 = vector.load %arg8[%c0_18, %c0_19] : memref<32x4xf32, #tpu.memory_space<vmem>>, vector<32x4xf32>
    %cst_20 = arith.constant dense<0.000000e+00> : vector<8x4xf32>
    %23 = tpu.matmul %21, %22, %cst_20 {dimension_numbers = #tpu.dot_dimension_numbers<[1], [0], [0], [1], [0, 0, 1, 1], [], []>} : vector<8x32xf32>, vector<32x4xf32>, vector<8x4xf32> -> vector<8x4xf32>
    %c0_21 = arith.constant 0 : index
    %c0_22 = arith.constant 0 : index
    %24 = vector.load %arg9[%c0_21, %c0_22] : memref<1x4xf32, #tpu.memory_space<vmem>>, vector<1x4xf32>
    %25 = vector.broadcast %24 : vector<1x4xf32> to vector<8x4xf32>
    %26 = arith.addf %23, %25 : vector<8x4xf32>
    %27 = math.tanh %26 : vector<8x4xf32>
    %c0_23 = arith.constant 0 : index
    %c0_24 = arith.constant 0 : index
    %28 = vector.load %arg10[%c0_23, %c0_24] : memref<8x4xf32, #tpu.memory_space<vmem>>, vector<8x4xf32>
    tpu.vector_store %arg10[%c0_23, %c0_24], %27 {strides = array<i32>} : memref<8x4xf32, #tpu.memory_space<vmem>>, vector<8x4xf32>,
    return
  }
  func.func @transform_0(%arg0: i32) -> (i32, i32) {
    %c0_i32 = arith.constant 0 : i32
    %c0_i32_0 = arith.constant 0 : i32
    return %arg0, %c0_i32 : i32, i32
  }
  func.func @transform_1(%arg0: i32) -> (i32, i32) {
    %c0_i32 = arith.constant 0 : i32
    %c0_i32_0 = arith.constant 0 : i32
    %c0_i32_1 = arith.constant 0 : i32
    return %c0_i32, %c0_i32_0 : i32, i32
  }
  func.func @transform_2(%arg0: i32) -> (i32, i32) {
    %c0_i32 = arith.constant 0 : i32
    %c0_i32_0 = arith.constant 0 : i32
    %c0_i32_1 = arith.constant 0 : i32
    return %c0_i32, %c0_i32_0 : i32, i32
  }
  func.func @transform_3(%arg0: i32) -> (i32, i32) {
    %c0_i32 = arith.constant 0 : i32
    %c0_i32_0 = arith.constant 0 : i32
    %c0_i32_1 = arith.constant 0 : i32
    return %c0_i32, %c0_i32_0 : i32, i32
  }
  func.func @transform_4(%arg0: i32) -> (i32, i32) {
    %c0_i32 = arith.constant 0 : i32
    %c0_i32_0 = arith.constant 0 : i32
    %c0_i32_1 = arith.constant 0 : i32
    return %c0_i32, %c0_i32_0 : i32, i32
  }
  func.func @transform_5(%arg0: i32) -> (i32, i32) {
    %c0_i32 = arith.constant 0 : i32
    %c0_i32_0 = arith.constant 0 : i32
    %c0_i32_1 = arith.constant 0 : i32
    return %c0_i32, %c0_i32_0 : i32, i32
  }
  func.func @transform_6(%arg0: i32) -> (i32, i32) {
    %c0_i32 = arith.constant 0 : i32
    %c0_i32_0 = arith.constant 0 : i32
    %c0_i32_1 = arith.constant 0 : i32
    return %c0_i32, %c0_i32_0 : i32, i32
  }
  func.func @transform_7(%arg0: i32) -> (i32, i32) {
    %c0_i32 = arith.constant 0 : i32
    %c0_i32_0 = arith.constant 0 : i32
    %c0_i32_1 = arith.constant 0 : i32
    return %c0_i32, %c0_i32_0 : i32, i32
  }
  func.func @transform_8(%arg0: i32) -> (i32, i32) {
    %c0_i32 = arith.constant 0 : i32
    %c0_i32_0 = arith.constant 0 : i32
    %c0_i32_1 = arith.constant 0 : i32
    return %c0_i32, %c0_i32_0 : i32, i32
  }
  func.func @transform_9(%arg0: i32) -> (i32, i32) {
    %c0_i32 = arith.constant 0 : i32
    %c0_i32_0 = arith.constant 0 : i32
    return %arg0, %c0_i32 : i32, i32
  }
}

</mosaic_0001>

<llo_original>
// kernel: tpu_custom_call.1
$region0: #{tpu_custom_call.1}
  #allocation0 [shape = 'u32[]', space=smem, size = 0x4, offset = 0x4, fixed_abs, tag = 'smem constant byte address 0x4 - core index']
  #allocation1 [shape = 'u32[144,128]{1,0:T(1,128)}', space=vmem, size = 0x12000, scoped, tag = 'internal scratch']
  %s0 = inlined_call_operand.vmem [shape: f32[8,16], index: 0, kind: input, shape index: {}]
  %s1 = inlined_call_operand.hbm [shape: f32[16,32], index: 1, kind: input, shape index: {}]
  %s2 = inlined_call_operand.vmem [shape: f32[1,32], index: 2, kind: input, shape index: {}]
  %s3 = inlined_call_operand.vmem [shape: f32[32,32], index: 3, kind: input, shape index: {}]
  %s4 = inlined_call_operand.vmem [shape: f32[1,32], index: 4, kind: input, shape index: {}]
  %s5 = inlined_call_operand.hbm [shape: f32[32,32], index: 5, kind: input, shape index: {}]
  %s6 = inlined_call_operand.vmem [shape: f32[1,32], index: 6, kind: input, shape index: {}]
  %s7 = inlined_call_operand.vmem [shape: f32[32,4], index: 7, kind: input, shape index: {}]
  %s8 = inlined_call_operand.vmem [shape: f32[1,4], index: 8, kind: input, shape index: {}]
  %s9 = inlined_call_operand.vmem [shape: f32[8,4], index: 9, kind: output, shape index: {}]
  %s10 = sld [smem:[#allocation0]]
  $region54: #{tpu_custom_call.1} parent=0
    _
  %s12 = ssub.s32 1, %s10
  %s13 = scalar_select 0, %s12, %s10
  $region1: #{tpu_custom_call.1} parent=0
    #allocation2 [shape = 'u8[8192]{0}', space=vmem, size = 0x2000, scoped, tag = 'input window, operand 1, single buffered']
    #allocation3 [shape = 's32[1]{0}', space=sflag, size = 0x4, scoped, tag = 'scoped memory for tpu_custom_call.1']
    #allocation4 [shape = 'u8[16384]{0}', space=vmem, size = 0x4000, scoped, tag = 'input window, operand 5, single buffered']
    #allocation5 [shape = 's32[1]{0}', space=sflag, size = 0x4, scoped, tag = 'scoped memory for tpu_custom_call.1']
    %14 = vsyncpa [#allocation3], 0
    %15 = vsyncpa [#allocation5], 0
    // Predicated region
    $region2: #{tpu_custom_call.1} parent=1 // pred_check
      _
    $region3: #{tpu_custom_call.1} parent=1 // pred_check_branch
      %17 = sbr.rel (0) target = $region5
    $region4: #{tpu_custom_call.1} parent=1 // pred_region
      _
    $region5: #{tpu_custom_call.1} parent=1 // pred_fallthru
      _
    // Predicated region
    $region6: #{tpu_custom_call.1} parent=1 // pred_check
      _
    $region7: #{tpu_custom_call.1} parent=1 // pred_check_branch
      %19 = sbr.rel (0) target = $region9
    $region8: #{tpu_custom_call.1} parent=1 // pred_region
      %s21 = ssub.s32 256, 256
      %22 = vsyncadd [#allocation3], %s21
      %s23 = sshll.u32 [#allocation2], 4
      %s24 = int_to_ptr.vmem [resolvable:$true] %s23
      %29 = dma.hbm_to_vmem [thread:$0]  %s1, 256, %s24, [#allocation3], 128, 128, 8
    $region9: #{tpu_custom_call.1} parent=1 // pred_fallthru
      _
    // Predicated region
    $region10: #{tpu_custom_call.1} parent=1 // pred_check
      _
    $region11: #{tpu_custom_call.1} parent=1 // pred_check_branch
      %31 = sbr.rel (0) target = $region13
    $region12: #{tpu_custom_call.1} parent=1 // pred_region
      _
    $region13: #{tpu_custom_call.1} parent=1 // pred_fallthru
      _
    // Predicated region
    $region14: #{tpu_custom_call.1} parent=1 // pred_check
      _
    $region15: #{tpu_custom_call.1} parent=1 // pred_check_branch
      %33 = sbr.rel (0) target = $region17
    $region16: #{tpu_custom_call.1} parent=1 // pred_region
      _
    $region17: #{tpu_custom_call.1} parent=1 // pred_fallthru
      _
    // Predicated region
    $region18: #{tpu_custom_call.1} parent=1 // pred_check
      _
    $region19: #{tpu_custom_call.1} parent=1 // pred_check_branch
      %35 = sbr.rel (0) target = $region21
    $region20: #{tpu_custom_call.1} parent=1 // pred_region
      _
    $region21: #{tpu_custom_call.1} parent=1 // pred_fallthru
      _
    // Predicated region
    $region22: #{tpu_custom_call.1} parent=1 // pred_check
      _
    $region23: #{tpu_custom_call.1} parent=1 // pred_check_branch
      %37 = sbr.rel (0) target = $region25
    $region24: #{tpu_custom_call.1} parent=1 // pred_region
      %s39 = ssub.s32 512, 512
      %40 = vsyncadd [#allocation5], %s39
      %s41 = sshll.u32 [#allocation4], 4
      %s42 = int_to_ptr.vmem [resolvable:$true] %s41
      %47 = dma.hbm_to_vmem [thread:$0]  %s5, 512, %s42, [#allocation5], 128, 128, 8
    $region25: #{tpu_custom_call.1} parent=1 // pred_fallthru
      _
    // Predicated region
    $region26: #{tpu_custom_call.1} parent=1 // pred_check
      _
    $region27: #{tpu_custom_call.1} parent=1 // pred_check_branch
      %49 = sbr.rel (0) target = $region29
    $region28: #{tpu_custom_call.1} parent=1 // pred_region
      _
    $region29: #{tpu_custom_call.1} parent=1 // pred_fallthru
      _
    // Predicated region
    $region30: #{tpu_custom_call.1} parent=1 // pred_check
      _
    $region31: #{tpu_custom_call.1} parent=1 // pred_check_branch
      %51 = sbr.rel (0) target = $region33
    $region32: #{tpu_custom_call.1} parent=1 // pred_region
      _
    $region33: #{tpu_custom_call.1} parent=1 // pred_fallthru
      _
    // Predicated region
    $region34: #{tpu_custom_call.1} parent=1 // pred_check
      _
    $region35: #{tpu_custom_call.1} parent=1 // pred_check_branch
      %53 = sbr.rel (0) target = $region37
    $region36: #{tpu_custom_call.1} parent=1 // pred_region
      _
    $region37: #{tpu_custom_call.1} parent=1 // pred_fallthru
      _
    // Predicated region
    $region38: #{tpu_custom_call.1} parent=1 // pred_check
      _
    $region39: #{tpu_custom_call.1} parent=1 // pred_check_branch
      %55 = sbr.rel (0) target = $region41
    $region40: #{tpu_custom_call.1} parent=1 // pred_region
      %56 = dma.done [#allocation3], 256
    $region41: #{tpu_custom_call.1} parent=1 // pred_fallthru
      _
    // Predicated region
    $region42: #{tpu_custom_call.1} parent=1 // pred_check
      _
    $region43: #{tpu_custom_call.1} parent=1 // pred_check_branch
      %58 = sbr.rel (0) target = $region45
    $region44: #{tpu_custom_call.1} parent=1 // pred_region
      %59 = dma.done [#allocation5], 512
    $region45: #{tpu_custom_call.1} parent=1 // pred_fallthru
      _
    %v60 = vld [vmem:[%s0] sm:$0xff]
    %v61 = vld [vmem:[#allocation2] sm:$0xff]
    %v62 = vld [vmem:[#allocation2 + $0x8] sm:$0xff]
    %v63 = vld [vmem:[%s2] sm:$0x1]
    %v65 = vlaneseq
    %v66 = vshrl.u32 %v65, 7
    %v67 = vsub.s32 0, %v66
    %v68 = vrot.slane %v63, %v67
    %vm70 = vcmask 130048
    %v72 = vsel %vm70, %v60, 0
    %74 = vmatprep.subr.mxu0 0.0
    %75 = vmatpush1.msra.mxu0 %v61
    %76 = vmatprep.subr.mxu0 0.0
    %77 = vmatpush1.msra.mxu0 %v62
    %78 = vmatprep.subr.mxu0 0.0
    %79 = vmatpush1.msra.mxu0 0.0
    %80 = vmatprep.subr.mxu0 0.0
    %81 = vmatpush1.msra.mxu0 0.0
    %82 = vmatprep.subr.mxu0 0.0
    %83 = vmatpush1.msra.mxu0 0.0
    %84 = vmatprep.subr.mxu0 0.0
    %85 = vmatpush1.msra.mxu0 0.0
    %86 = vmatprep.subr.mxu0 0.0
    %87 = vmatpush1.msra.mxu0 0.0
    %88 = vmatprep.subr.mxu0 0.0
    %89 = vmatpush1.msra.mxu0 0.0
    %90 = vmatprep.subr.mxu0 0.0
    %91 = vmatpush1.msra.mxu0 0.0
    %92 = vmatprep.subr.mxu0 0.0
    %93 = vmatpush1.msra.mxu0 0.0
    %94 = vmatprep.subr.mxu0 0.0
    %95 = vmatpush1.msra.mxu0 0.0
    %96 = vmatprep.subr.mxu0 0.0
    %97 = vmatpush1.msra.mxu0 0.0
    %98 = vmatprep.subr.mxu0 0.0
    %99 = vmatpush1.msra.mxu0 0.0
    %100 = vmatprep.subr.mxu0 0.0
    %101 = vmatpush1.msra.mxu0 0.0
    %102 = vmatprep.subr.mxu0 0.0
    %103 = vmatpush1.msra.mxu0 0.0
    %104 = vmatprep.subr.mxu0 0.0
    %105 = vmatpush1.msra.mxu0 0.0
    %106 = vmatprep.subr.mxu0 0.0
    %107 = vmatpush1.msra.mxu0 0.0
    %108 = vmatprep.subr.mxu0 0.0
    %109 = vmatpush1.msra.mxu0 0.0
    %110 = vmatprep.subr.mxu0 0.0
    %111 = vmatpush1.msra.mxu0 0.0
    %112 = vmatprep.subr.mxu0 0.0
    %113 = vmatpush1.msra.mxu0 0.0
    %114 = vmatprep.subr.mxu0 0.0
    %115 = vmatpush1.msra.mxu0 0.0
    %116 = vmatprep.subr.mxu0 0.0
    %117 = vmatpush1.msra.mxu0 0.0
    %118 = vmatprep.subr.mxu0 0.0
    %119 = vmatpush1.msra.mxu0 0.0
    %120 = vmatprep.subr.mxu0 0.0
    %121 = vmatpush1.msra.mxu0 0.0
    %122 = vmatprep.subr.mxu0 0.0
    %123 = vmatpush1.msra.mxu0 0.0
    %124 = vmatprep.subr.mxu0 0.0
    %125 = vmatpush1.msra.mxu0 0.0
    %126 = vmatprep.subr.mxu0 0.0
    %127 = vmatpush1.msra.mxu0 0.0
    %128 = vmatprep.subr.mxu0 0.0
    %129 = vmatpush1.msra.mxu0 0.0
    %130 = vmatprep.subr.mxu0 0.0
    %131 = vmatpush1.msra.mxu0 0.0
    %132 = vmatprep.subr.mxu0 0.0
    %133 = vmatpush1.msra.mxu0 0.0
    %134 = vmatprep.subr.mxu0 0.0
    %135 = vmatpush1.msra.mxu0 0.0
    %136 = vmatprep.subr.mxu0 0.0
    %137 = vmatpush1.msra.mxu0 0.0
    %138 = vmatprep.mubr.f32.mxu0 0.0
    %139 = vmatmul.mubr.f32.gmra.mrb[0].mxu0 %v72
    %v140 = vpop.f32.mrb[0].mxu0
    %v141 = vadd.f32 %v68, %v140
    %v142 = vpop.f32.mrb[0].mxu0
    %143 = vdwg.mxu0
    %v144 = vmax.f32 %v141, 0.0
    %v145 = vld [vmem:[%s3] sm:$0xff]
    %v146 = vld [vmem:[%s3 + $0x8] sm:$0xff]
    %v147 = vld [vmem:[%s3 + $0x10] sm:$0xff]
    %v148 = vld [vmem:[%s3 + $0x18] sm:$0xff]
    %v149 = vld [vmem:[%s4] sm:$0x1]
    %v151 = vlaneseq
    %v152 = vshrl.u32 %v151, 7
    %v153 = vsub.s32 0, %v152
    %v154 = vrot.slane %v149, %v153
    %vm156 = vcmask 261120
    %v158 = vsel %vm156, %v144, 0
    %160 = vmatprep.subr.mxu0 0.0
    %161 = vmatpush1.msra.mxu0 %v145
    %162 = vmatprep.subr.mxu0 0.0
    %163 = vmatpush1.msra.mxu0 %v146
    %164 = vmatprep.subr.mxu0 0.0
    %165 = vmatpush1.msra.mxu0 %v147
    %166 = vmatprep.subr.mxu0 0.0
    %167 = vmatpush1.msra.mxu0 %v148
    %168 = vmatprep.subr.mxu0 0.0
    %169 = vmatpush1.msra.mxu0 0.0
    %170 = vmatprep.subr.mxu0 0.0
    %171 = vmatpush1.msra.mxu0 0.0
    %172 = vmatprep.subr.mxu0 0.0
    %173 = vmatpush1.msra.mxu0 0.0
    %174 = vmatprep.subr.mxu0 0.0
    %175 = vmatpush1.msra.mxu0 0.0
    %176 = vmatprep.subr.mxu0 0.0
    %177 = vmatpush1.msra.mxu0 0.0
    %178 = vmatprep.subr.mxu0 0.0
    %179 = vmatpush1.msra.mxu0 0.0
    %180 = vmatprep.subr.mxu0 0.0
    %181 = vmatpush1.msra.mxu0 0.0
    %182 = vmatprep.subr.mxu0 0.0
    %183 = vmatpush1.msra.mxu0 0.0
    %184 = vmatprep.subr.mxu0 0.0
    %185 = vmatpush1.msra.mxu0 0.0
    %186 = vmatprep.subr.mxu0 0.0
    %187 = vmatpush1.msra.mxu0 0.0
    %188 = vmatprep.subr.mxu0 0.0
    %189 = vmatpush1.msra.mxu0 0.0
    %190 = vmatprep.subr.mxu0 0.0
    %191 = vmatpush1.msra.mxu0 0.0
    %192 = vmatprep.subr.mxu0 0.0
    %193 = vmatpush1.msra.mxu0 0.0
    %194 = vmatprep.subr.mxu0 0.0
    %195 = vmatpush1.msra.mxu0 0.0
    %196 = vmatprep.subr.mxu0 0.0
    %197 = vmatpush1.msra.mxu0 0.0
    %198 = vmatprep.subr.mxu0 0.0
    %199 = vmatpush1.msra.mxu0 0.0
    %200 = vmatprep.subr.mxu0 0.0
    %201 = vmatpush1.msra.mxu0 0.0
    %202 = vmatprep.subr.mxu0 0.0
    %203 = vmatpush1.msra.mxu0 0.0
    %204 = vmatprep.subr.mxu0 0.0
    %205 = vmatpush1.msra.mxu0 0.0
    %206 = vmatprep.subr.mxu0 0.0
    %207 = vmatpush1.msra.mxu0 0.0
    %208 = vmatprep.subr.mxu0 0.0
    %209 = vmatpush1.msra.mxu0 0.0
    %210 = vmatprep.subr.mxu0 0.0
    %211 = vmatpush1.msra.mxu0 0.0
    %212 = vmatprep.subr.mxu0 0.0
    %213 = vmatpush1.msra.mxu0 0.0
    %214 = vmatprep.subr.mxu0 0.0
    %215 = vmatpush1.msra.mxu0 0.0
    %216 = vmatprep.subr.mxu0 0.0
    %217 = vmatpush1.msra.mxu0 0.0
    %218 = vmatprep.subr.mxu0 0.0
    %219 = vmatpush1.msra.mxu0 0.0
    %220 = vmatprep.subr.mxu0 0.0
    %221 = vmatpush1.msra.mxu0 0.0
    %222 = vmatprep.subr.mxu0 0.0
    %223 = vmatpush1.msra.mxu0 0.0
    %224 = vmatprep.mubr.f32.mxu0 0.0
    %225 = vmatmul.mubr.f32.gmra.mrb[0].mxu0 %v158
    %v226 = vpop.f32.mrb[0].mxu0
    %v227 = vadd.f32 %v154, %v226
    %v228 = vpop.f32.mrb[0].mxu0
    %229 = vdwg.mxu0
    %v230 = vmax.f32 %v227, 0.0
    %v231 = vld [vmem:[#allocation4] sm:$0xff]
    %v232 = vld [vmem:[#allocation4 + $0x8] sm:$0xff]
    %v233 = vld [vmem:[#allocation4 + $0x10] sm:$0xff]
    %v234 = vld [vmem:[#allocation4 + $0x18] sm:$0xff]
    %v235 = vld [vmem:[%s6] sm:$0x1]
    %v237 = vlaneseq
    %v238 = vshrl.u32 %v237, 7
    %v239 = vsub.s32 0, %v238
    %v240 = vrot.slane %v235, %v239
    %v243 = vsel %vm156, %v230, 0
    %245 = vmatprep.subr.mxu0 0.0
    %246 = vmatpush1.msra.mxu0 %v231
    %247 = vmatprep.subr.mxu0 0.0
    %248 = vmatpush1.msra.mxu0 %v232
    %249 = vmatprep.subr.mxu0 0.0
    %250 = vmatpush1.msra.mxu0 %v233
    %251 = vmatprep.subr.mxu0 0.0
    %252 = vmatpush1.msra.mxu0 %v234
    %253 = vmatprep.subr.mxu0 0.0
    %254 = vmatpush1.msra.mxu0 0.0
    %255 = vmatprep.subr.mxu0 0.0
    %256 = vmatpush1.msra.mxu0 0.0
    %257 = vmatprep.subr.mxu0 0.0
    %258 = vmatpush1.msra.mxu0 0.0
    %259 = vmatprep.subr.mxu0 0.0
    %260 = vmatpush1.msra.mxu0 0.0
    %261 = vmatprep.subr.mxu0 0.0
    %262 = vmatpush1.msra.mxu0 0.0
    %263 = vmatprep.subr.mxu0 0.0
    %264 = vmatpush1.msra.mxu0 0.0
    %265 = vmatprep.subr.mxu0 0.0
    %266 = vmatpush1.msra.mxu0 0.0
    %267 = vmatprep.subr.mxu0 0.0
    %268 = vmatpush1.msra.mxu0 0.0
    %269 = vmatprep.subr.mxu0 0.0
    %270 = vmatpush1.msra.mxu0 0.0
    %271 = vmatprep.subr.mxu0 0.0
    %272 = vmatpush1.msra.mxu0 0.0
    %273 = vmatprep.subr.mxu0 0.0
    %274 = vmatpush1.msra.mxu0 0.0
    %275 = vmatprep.subr.mxu0 0.0
    %276 = vmatpush1.msra.mxu0 0.0
    %277 = vmatprep.subr.mxu0 0.0
    %278 = vmatpush1.msra.mxu0 0.0
    %279 = vmatprep.subr.mxu0 0.0
    %280 = vmatpush1.msra.mxu0 0.0
    %281 = vmatprep.subr.mxu0 0.0
    %282 = vmatpush1.msra.mxu0 0.0
    %283 = vmatprep.subr.mxu0 0.0
    %284 = vmatpush1.msra.mxu0 0.0
    %285 = vmatprep.subr.mxu0 0.0
    %286 = vmatpush1.msra.mxu0 0.0
    %287 = vmatprep.subr.mxu0 0.0
    %288 = vmatpush1.msra.mxu0 0.0
    %289 = vmatprep.subr.mxu0 0.0
    %290 = vmatpush1.msra.mxu0 0.0
    %291 = vmatprep.subr.mxu0 0.0
    %292 = vmatpush1.msra.mxu0 0.0
    %293 = vmatprep.subr.mxu0 0.0
    %294 = vmatpush1.msra.mxu0 0.0
    %295 = vmatprep.subr.mxu0 0.0
    %296 = vmatpush1.msra.mxu0 0.0
    %297 = vmatprep.subr.mxu0 0.0
    %298 = vmatpush1.msra.mxu0 0.0
    %299 = vmatprep.subr.mxu0 0.0
    %300 = vmatpush1.msra.mxu0 0.0
    %301 = vmatprep.subr.mxu0 0.0
    %302 = vmatpush1.msra.mxu0 0.0
    %303 = vmatprep.subr.mxu0 0.0
    %304 = vmatpush1.msra.mxu0 0.0
    %305 = vmatprep.subr.mxu0 0.0
    %306 = vmatpush1.msra.mxu0 0.0
    %307 = vmatprep.subr.mxu0 0.0
    %308 = vmatpush1.msra.mxu0 0.0
    %309 = vmatprep.mubr.f32.mxu0 0.0
    %310 = vmatmul.mubr.f32.gmra.mrb[0].mxu0 %v243
    %v311 = vpop.f32.mrb[0].mxu0
    %v312 = vadd.f32 %v240, %v311
    %v313 = vpop.f32.mrb[0].mxu0
    %314 = vdwg.mxu0
    %v315 = vmax.f32 %v312, 0.0
    %v316 = vld [vmem:[%s7] sm:$0xff]
    %v317 = vld [vmem:[%s7 + $0x8] sm:$0xff]
    %v318 = vld [vmem:[%s7 + $0x10] sm:$0xff]
    %v319 = vld [vmem:[%s7 + $0x18] sm:$0xff]
    %v320 = vld [vmem:[%s8] sm:$0x1]
    %v322 = vlaneseq
    %v323 = vshrl.u32 %v322, 7
    %v324 = vsub.s32 0, %v323
    %v325 = vrot.slane %v320, %v324
    %v328 = vsel %vm156, %v315, 0
    %330 = vmatprep.subr.mxu0 0.0
    %331 = vmatpush1.msra.mxu0 %v316
    %332 = vmatprep.subr.mxu0 0.0
    %333 = vmatpush1.msra.mxu0 %v317
    %334 = vmatprep.subr.mxu0 0.0
    %335 = vmatpush1.msra.mxu0 %v318
    %336 = vmatprep.subr.mxu0 0.0
    %337 = vmatpush1.msra.mxu0 %v319
    %338 = vmatprep.subr.mxu0 0.0
    %339 = vmatpush1.msra.mxu0 0.0
    %340 = vmatprep.subr.mxu0 0.0
    %341 = vmatpush1.msra.mxu0 0.0
    %342 = vmatprep.subr.mxu0 0.0
    %343 = vmatpush1.msra.mxu0 0.0
    %344 = vmatprep.subr.mxu0 0.0
    %345 = vmatpush1.msra.mxu0 0.0
    %346 = vmatprep.subr.mxu0 0.0
    %347 = vmatpush1.msra.mxu0 0.0
    %348 = vmatprep.subr.mxu0 0.0
    %349 = vmatpush1.msra.mxu0 0.0
    %350 = vmatprep.subr.mxu0 0.0
    %351 = vmatpush1.msra.mxu0 0.0
    %352 = vmatprep.subr.mxu0 0.0
    %353 = vmatpush1.msra.mxu0 0.0
    %354 = vmatprep.subr.mxu0 0.0
    %355 = vmatpush1.msra.mxu0 0.0
    %356 = vmatprep.subr.mxu0 0.0
    %357 = vmatpush1.msra.mxu0 0.0
    %358 = vmatprep.subr.mxu0 0.0
    %359 = vmatpush1.msra.mxu0 0.0
    %360 = vmatprep.subr.mxu0 0.0
    %361 = vmatpush1.msra.mxu0 0.0
    %362 = vmatprep.subr.mxu0 0.0
    %363 = vmatpush1.msra.mxu0 0.0
    %364 = vmatprep.subr.mxu0 0.0
    %365 = vmatpush1.msra.mxu0 0.0
    %366 = vmatprep.subr.mxu0 0.0
    %367 = vmatpush1.msra.mxu0 0.0
    %368 = vmatprep.subr.mxu0 0.0
    %369 = vmatpush1.msra.mxu0 0.0
    %370 = vmatprep.subr.mxu0 0.0
    %371 = vmatpush1.msra.mxu0 0.0
    %372 = vmatprep.subr.mxu0 0.0
    %373 = vmatpush1.msra.mxu0 0.0
    %374 = vmatprep.subr.mxu0 0.0
    %375 = vmatpush1.msra.mxu0 0.0
    %376 = vmatprep.subr.mxu0 0.0
    %377 = vmatpush1.msra.mxu0 0.0
    %378 = vmatprep.subr.mxu0 0.0
    %379 = vmatpush1.msra.mxu0 0.0
    %380 = vmatprep.subr.mxu0 0.0
    %381 = vmatpush1.msra.mxu0 0.0
    %382 = vmatprep.subr.mxu0 0.0
    %383 = vmatpush1.msra.mxu0 0.0
    %384 = vmatprep.subr.mxu0 0.0
    %385 = vmatpush1.msra.mxu0 0.0
    %386 = vmatprep.subr.mxu0 0.0
    %387 = vmatpush1.msra.mxu0 0.0
    %388 = vmatprep.subr.mxu0 0.0
    %389 = vmatpush1.msra.mxu0 0.0
    %390 = vmatprep.subr.mxu0 0.0
    %391 = vmatpush1.msra.mxu0 0.0
    %392 = vmatprep.subr.mxu0 0.0
    %393 = vmatpush1.msra.mxu0 0.0
    %394 = vmatprep.mubr.f32.mxu0 0.0
    %395 = vmatmul.mubr.f32.gmra.mrb[0].mxu0 %v328
    %v396 = vpop.f32.mrb[0].mxu0
    %v397 = vadd.f32 %v325, %v396
    %v398 = vpop.f32.mrb[0].mxu0
    %399 = vdwg.mxu0
    %v400 = vtanh.pop %v397
    %vm401 = vcmask 31744
    %402 = vst.msk [vmem:[%s9] sm:$0xff] %vm401, %v400
    // Predicated region
    $region46: #{tpu_custom_call.1} parent=1 // pred_check
      _
    $region47: #{tpu_custom_call.1} parent=1 // pred_check_branch
      %404 = sbr.rel (0) target = $region49
    $region48: #{tpu_custom_call.1} parent=1 // pred_region
      _
    $region49: #{tpu_custom_call.1} parent=1 // pred_fallthru
      _
    // Predicated region
    $region50: #{tpu_custom_call.1} parent=1 // pred_check
      _
    $region51: #{tpu_custom_call.1} parent=1 // pred_check_branch
      %406 = sbr.rel (0) target = $region53
    $region52: #{tpu_custom_call.1} parent=1 // pred_region
      _
    $region53: #{tpu_custom_call.1} parent=1 // pred_fallthru
      _
    %407 = vsyncpa [#allocation3], 1
    %408 = vsyncpa [#allocation5], 1

</llo_original>
